<compile_context>
chip_gen: v7x
topology: tpu7x:2x2x1
jax: 0.10.0
libtpu: 0.0.40
codegen_flags: <defaults>
</compile_context>

<pallas_src>
import jax
import jax.numpy as jnp
from jax.experimental import pallas as pl
from jax.experimental.pallas import tpu as pltpu


def _round_up(a, b):
    return ((a + b - 1) // b) * b


def _vmem_params():
    """Returns (target_input_tile_bytes, footprint_budget_bytes, vmem_limit_bytes|None)."""
    try:
        kind = jax.devices()[0].device_kind.lower()
    except Exception:  # pragma: no cover - param selection must never crash
        kind = ""
    if "v5" in kind or "v6" in kind:          # 128 MiB VMEM parts: go big
        return 8 * 2**20, 56 * 2**20, 80 * 2**20
    if "v7" in kind:                          # 64 MiB VMEM per TensorCore
        return 4 * 2**20, 22 * 2**20, 32 * 2**20
    # Unknown / older part: stay inside the default scoped-VMEM limit.
    return 2 * 2**20, 10 * 2**20, None


def _choose_tiling(nc, H, W, itemsize, target_in_bytes, fp_budget_bytes):
    """Pick (P planes/block, TH rows/block, S stripes/plane).

    Budgets the *padded* VMEM layout: lanes rounded to 128, sublanes to 8,
    2x double-buffered native input plus ~3 f32-sized live temporaries.
    """
    lanes = _round_up(W, 128)

    def footprint(padded_elems):
        return 2 * padded_elems * itemsize + 3 * padded_elems * 4

    plane_elems = _round_up(H, 8) * lanes
    plane_in = plane_elems * itemsize
    if plane_in <= target_in_bytes and footprint(plane_elems) <= fp_budget_bytes:
        # Whole planes fit: batch as many planes per block as the budget allows.
        p_by_in = max(1, target_in_bytes // plane_in)
        p_by_fp = max(1, fp_budget_bytes // footprint(plane_elems))
        p = int(min(nc, p_by_in, p_by_fp))
        return p, H, 1

    # Single plane too large for the budget: stripe H with P = 1. TH is a
    # multiple of 8 so stripe blocks respect the (8, 128) constraint; H is
    # edge-padded to S*TH in the wrapper.
    row8_elems = 8 * lanes
    row8_in = row8_elems * itemsize
    r_by_in = max(1, target_in_bytes // row8_in)
    r_by_fp = max(1, fp_budget_bytes // footprint(row8_elems))
    th = 8 * int(min(r_by_in, r_by_fp))
    th = max(8, min(th, _round_up(H, 8)))
    s = -(-H // th)
    return 1, th, s


def _pair_diff_sq_sum(x, axis, use_roll):
    """sum of (x[i+1] - x[i])^2 over adjacent pairs along `axis` of a (P, TH, W) block."""
    size = x.shape[axis]
    if size <= 1:
        return jnp.float32(0.0)
    if use_roll:
        # Roll by (size-1) pairs every element with its neighbour along `axis`
        # (XLU slot, full-shape => no misaligned relayouts). Whichever direction
        # the hardware rotate uses, the *set* of adjacent pairs is identical;
        # only the single wrap pair (first vs last) must be removed, which we do
        # after the full reduction from a thin slice.
        shifted = pltpu.roll(x, shift=size - 1, axis=axis)
        d = shifted.astype(jnp.float32) - x.astype(jnp.float32)
        total = jnp.sum(d * d)
        if axis == 1:
            first, last = x[:, 0:1, :], x[:, size - 1:size, :]
        else:
            first, last = x[:, :, 0:1], x[:, :, size - 1:size]
        wrap = first.astype(jnp.float32) - last.astype(jnp.float32)
        return total - jnp.sum(wrap * wrap)
    # Fallback (small / unaligned blocks): sliced diffs, casts fused per-slice.
    if axis == 1:
        hi, lo = x[:, 1:, :], x[:, :-1, :]
    else:
        hi, lo = x[:, :, 1:], x[:, :, :-1]
    d = hi.astype(jnp.float32) - lo.astype(jnp.float32)
    return jnp.sum(d * d)


def _tv_body(x_ref, o_ref, carry_ref, n_stripes):
    x = x_ref[...]                       # (P, TH, W), native dtype
    _, TH, W = x.shape

    # Roll fast path only on fully native-tiled f32 blocks (the large,
    # perf-critical shapes); otherwise use the known-lowering sliced diffs.
    aligned = (x.dtype == jnp.float32) and (TH % 8 == 0) and (W % 128 == 0)

    partial = _pair_diff_sq_sum(x, 2, aligned) + _pair_diff_sq_sum(x, 1, aligned)

    if n_stripes > 1:
        # Cross-stripe H boundary: carry the previous stripe's last row.
        s = pl.program_id(1)
        first_row = x[:, 0:1, :].astype(jnp.float32)

        @pl.when(s == 0)
        def _():
            carry_ref[...] = first_row   # boundary term vanishes at stripe 0

        db = first_row - carry_ref[...]
        partial = partial + jnp.sum(db * db)
        carry_ref[...] = x[:, TH - 1:TH, :].astype(jnp.float32)

    # Lane-dense (8, 128) per-block partial: unmasked vst, cheap final reduce.
    o_ref[...] = jnp.broadcast_to(partial, o_ref.shape)


def tv_loss(x, *, _force_target_tile_bytes=None):
    """x: (N, C, H, W) -> scalar, matching torch TV_Loss.forward."""
    N, C, H, W = x.shape
    nc = N * C
    out_dtype = x.dtype
    itemsize = jnp.dtype(x.dtype).itemsize

    target_in, fp_budget, vmem_limit = _vmem_params()
    if _force_target_tile_bytes is not None:   # test hook
        target_in = int(_force_target_tile_bytes)

    P, TH, S = _choose_tiling(nc, H, W, itemsize, target_in, fp_budget)
    Hpad = TH * S
    nc_pad = _round_up(nc, P)
    G = nc_pad // P

    x_planes = x.reshape(nc, H, W)
    x_in = x_planes
    if nc_pad != nc:
        # Zero planes contribute exactly 0 to TV loss.
        x_in = jnp.pad(x_in, ((0, nc_pad - nc), (0, 0), (0, 0)))
    if Hpad != H:
        # Edge-replicated rows add no H-direction terms; their spurious
        # W-direction terms are subtracted exactly below.
        x_in = jnp.pad(x_in, ((0, 0), (0, Hpad - H), (0, 0)), mode="edge")

    if S > 1:
        kernel = lambda x_ref, o_ref, carry_ref: _tv_body(x_ref, o_ref, carry_ref, S)
        scratch = [pltpu.VMEM((P, 1, W), jnp.float32)]
    else:
        kernel = lambda x_ref, o_ref: _tv_body(x_ref, o_ref, None, S)
        scratch = []

    cp_kwargs = dict(dimension_semantics=("parallel", "arbitrary"))
    if vmem_limit is not None:
        cp_kwargs["vmem_limit_bytes"] = int(vmem_limit)

    out_index = lambda g, s: (g * S + s, 0, 0)

    partials = pl.pallas_call(
        kernel,
        out_shape=jax.ShapeDtypeStruct((G * S, 8, 128), jnp.float32),
        grid=(G, S),
        in_specs=[pl.BlockSpec((P, TH, W), lambda g, s: (g, s, 0))],
        out_specs=pl.BlockSpec((1, 8, 128), out_index),
        scratch_shapes=scratch,
        compiler_params=pltpu.CompilerParams(**cp_kwargs),
        cost_estimate=pl.CostEstimate(
            flops=6 * nc_pad * Hpad * W,
            transcendentals=0,
            bytes_accessed=nc_pad * Hpad * W * itemsize + G * S * 8 * 128 * 4,
        ),
    )(x_in)

    total = jnp.sum(partials[:, 0, 0])

    if Hpad != H and W > 1:
        # Remove the W-direction terms contributed by the (Hpad - H) replicated
        # pad rows (each equals the last real row's W-diff sum).
        lr = x_planes[:, H - 1, :].astype(jnp.float32)
        wd = lr[:, 1:] - lr[:, :-1]
        total = total - jnp.float32(Hpad - H) * jnp.sum(wd * wd)

    return total.astype(out_dtype)


def tv_loss_ref(x):
    xf = x.astype(jnp.float32)
    tv_h = jnp.sum(jnp.square(xf[:, :, 1:, :] - xf[:, :, :-1, :]))
    tv_w = jnp.sum(jnp.square(xf[:, :, :, 1:] - xf[:, :, :, :-1]))
    return (tv_h + tv_w).astype(x.dtype)


if __name__ == "__main__":
    key = jax.random.PRNGKey(0)
    k1, k2, k3 = jax.random.split(key, 3)

    # Primary shape implied by the module.
    x1 = jax.random.normal(k1, (2, 4, 16, 16), dtype=jnp.float32)
    r1 = jax.block_until_ready(tv_loss(x1))
    e1 = jax.block_until_ready(tv_loss_ref(x1))
    assert jnp.allclose(r1, e1, rtol=1e-5, atol=1e-5), (r1, e1)

    # Exercise the intra-plane H-striping (carry) path with a tiny forced tile.
    x2 = jax.random.normal(k2, (1, 2, 20, 48), dtype=jnp.float32)
    r2 = jax.block_until_ready(tv_loss(x2, _force_target_tile_bytes=4096))
    e2 = jax.block_until_ready(tv_loss_ref(x2))
    assert jnp.allclose(r2, e2, rtol=1e-5, atol=1e-5), (r2, e2)

    # Exercise zero-plane padding (P does not divide N*C).
    x3 = jax.random.normal(k3, (3, 1, 16, 16), dtype=jnp.float32)
    r3 = jax.block_until_ready(tv_loss(x3, _force_target_tile_bytes=16384))
    e3 = jax.block_until_ready(tv_loss_ref(x3))
    assert jnp.allclose(r3, e3, rtol=1e-5, atol=1e-5), (r3, e3)

    print("KERNEL_OK")
</pallas_src>

<mosaic_0001>
module attributes {stable_mosaic.version = 11 : i64} {
  func.func @_lambda_(%arg0: i32, %arg1: i32, %arg2: memref<8x16x16xf32, #tpu.memory_space<vmem>>, %arg3: memref<1x8x128xf32, #tpu.memory_space<vmem>>) attributes {dimension_semantics = [#tpu.dimension_semantics<parallel>, #tpu.dimension_semantics<arbitrary>], iteration_bounds = array<i64: 1, 1>, scalar_prefetch = 0 : i64, scratch_operands = 0 : i64, tpu.core_type = #tpu.core_type<tc>, window_params = [{transform_indices = @transform_0, window_bounds = array<i64: 8, 16, 16>}, {transform_indices = @transform_1, window_bounds = array<i64: 1, 8, 128>}]} {
    %c0 = arith.constant 0 : index
    %c0_0 = arith.constant 0 : index
    %c0_1 = arith.constant 0 : index
    %0 = vector.load %arg2[%c0, %c0_0, %c0_1] : memref<8x16x16xf32, #tpu.memory_space<vmem>>, vector<8x16x16xf32>
    %1 = vector.extract_strided_slice %0 {offsets = [0, 0, 1], sizes = [8, 16, 15], strides = [1, 1, 1]} : vector<8x16x16xf32> to vector<8x16x15xf32>
    %2 = vector.extract_strided_slice %0 {offsets = [0, 0, 0], sizes = [8, 16, 15], strides = [1, 1, 1]} : vector<8x16x16xf32> to vector<8x16x15xf32>
    %3 = arith.subf %1, %2 : vector<8x16x15xf32>
    %4 = arith.mulf %3, %3 : vector<8x16x15xf32>
    %5 = vector.shape_cast %4 : vector<8x16x15xf32> to vector<1x8x16x15xf32>
    %cst = arith.constant dense<0.000000e+00> : vector<1xf32>
    %6 = vector.multi_reduction <add>, %5, %cst [1, 2, 3] : vector<1x8x16x15xf32> to vector<1xf32>
    %7 = vector.shape_cast %6 : vector<1xf32> to vector<1x1x1x1xf32>
    %8 = vector.extract %7[0, 0, 0, 0] : f32 from vector<1x1x1x1xf32>
    %9 = vector.extract_strided_slice %0 {offsets = [0, 1, 0], sizes = [8, 15, 16], strides = [1, 1, 1]} : vector<8x16x16xf32> to vector<8x15x16xf32>
    %10 = vector.extract_strided_slice %0 {offsets = [0, 0, 0], sizes = [8, 15, 16], strides = [1, 1, 1]} : vector<8x16x16xf32> to vector<8x15x16xf32>
    %11 = arith.subf %9, %10 : vector<8x15x16xf32>
    %12 = arith.mulf %11, %11 : vector<8x15x16xf32>
    %13 = vector.shape_cast %12 : vector<8x15x16xf32> to vector<1x8x15x16xf32>
    %cst_2 = arith.constant dense<0.000000e+00> : vector<1xf32>
    %14 = vector.multi_reduction <add>, %13, %cst_2 [1, 2, 3] : vector<1x8x15x16xf32> to vector<1xf32>
    %15 = vector.shape_cast %14 : vector<1xf32> to vector<1x1x1x1xf32>
    %16 = vector.extract %15[0, 0, 0, 0] : f32 from vector<1x1x1x1xf32>
    %17 = arith.addf %8, %16 : f32
    %18 = vector.broadcast %17 : f32 to vector<1x8x128xf32>
    %c0_3 = arith.constant 0 : index
    %c0_4 = arith.constant 0 : index
    %c0_5 = arith.constant 0 : index
    %19 = vector.load %arg3[%c0_3, %c0_4, %c0_5] : memref<1x8x128xf32, #tpu.memory_space<vmem>>, vector<1x8x128xf32>
    tpu.vector_store %arg3[%c0_3, %c0_4, %c0_5], %18 {strides = array<i32>} : memref<1x8x128xf32, #tpu.memory_space<vmem>>, vector<1x8x128xf32>,
    return
  }
  func.func @transform_0(%arg0: i32, %arg1: i32) -> (i32, i32, i32) {
    %c0_i32 = arith.constant 0 : i32
    %c0_i32_0 = arith.constant 0 : i32
    return %arg0, %arg1, %c0_i32 : i32, i32, i32
  }
  func.func @transform_1(%arg0: i32, %arg1: i32) -> (i32, i32, i32) {
    %c1_i32 = arith.constant 1 : i32
    %0 = arith.muli %arg0, %c1_i32 : i32
    %1 = arith.addi %0, %arg1 : i32
    %c0_i32 = arith.constant 0 : i32
    %c0_i32_0 = arith.constant 0 : i32
    %c0_i32_1 = arith.constant 0 : i32
    return %1, %c0_i32, %c0_i32_0 : i32, i32, i32
  }
}

</mosaic_0001>

<llo_original>
// kernel: tpu_custom_call.1
$region0: #{tpu_custom_call.1}
  #allocation0 [shape = 'u32[]', space=smem, size = 0x4, offset = 0x4, fixed_abs, tag = 'smem constant byte address 0x4 - core index']
  #allocation1 [shape = 'u32[144,128]{1,0:T(1,128)}', space=vmem, size = 0x12000, scoped, tag = 'internal scratch']
  %s0 = inlined_call_operand.hbm [shape: f32[8,16,16], index: 0, kind: input, shape index: {}]
  %s1 = inlined_call_operand.hbm [shape: f32[1,8,128], index: 1, kind: output, shape index: {}]
  %s2 = sld [smem:[#allocation0]]
  $region18: #{tpu_custom_call.1} parent=0
    _
  %s4 = ssub.s32 1, %s2
  %s5 = scalar_select 0, %s4, %s2
  $region1: #{tpu_custom_call.1} parent=0
    #allocation2 [shape = 'u8[65536]{0}', space=vmem, size = 0x10000, scoped, tag = 'input window, operand 0, single buffered']
    #allocation3 [shape = 's32[1]{0}', space=sflag, size = 0x4, scoped, tag = 'scoped memory for tpu_custom_call.1']
    #allocation4 [shape = 's32[1]{0}', space=sflag, size = 0x4, scoped, tag = 'scoped memory for tpu_custom_call.1']
    #allocation5 [shape = 'u8[4096]{0}', space=vmem, size = 0x1000, scoped, tag = 'output window, operand 0, single buffered']
    %6 = vsyncpa [#allocation3], 0
    %7 = vsyncpa [#allocation4], 0
    // Predicated region
    $region2: #{tpu_custom_call.1} parent=1 // pred_check
      _
    $region3: #{tpu_custom_call.1} parent=1 // pred_check_branch
      %9 = sbr.rel (0) target = $region5
    $region4: #{tpu_custom_call.1} parent=1 // pred_region
      %s11 = ssub.s32 2048, 2048
      %12 = vsyncadd [#allocation3], %s11
      %s13 = sshll.u32 [#allocation2], 4
      %s14 = int_to_ptr.vmem [resolvable:$true] %s13
      %19 = dma.hbm_to_vmem [thread:$0]  %s0, 2048, %s14, [#allocation3], 128, 128, 8
    $region5: #{tpu_custom_call.1} parent=1 // pred_fallthru
      _
    // Predicated region
    $region6: #{tpu_custom_call.1} parent=1 // pred_check
      _
    $region7: #{tpu_custom_call.1} parent=1 // pred_check_branch
      %21 = sbr.rel (0) target = $region9
    $region8: #{tpu_custom_call.1} parent=1 // pred_region
      %22 = dma.done [#allocation3], 2048
    $region9: #{tpu_custom_call.1} parent=1 // pred_fallthru
      _
    %s23 = sadd.s32 0, 0
    %v24 = vld [vmem:[#allocation2] sm:$0xff]
    %v25 = vld [vmem:[#allocation2 + $0x8] sm:$0xff]
    %v26 = vld [vmem:[#allocation2 + $0x10] sm:$0xff]
    %v27 = vld [vmem:[#allocation2 + $0x18] sm:$0xff]
    %v28 = vld [vmem:[#allocation2 + $0x20] sm:$0xff]
    %v29 = vld [vmem:[#allocation2 + $0x28] sm:$0xff]
    %v30 = vld [vmem:[#allocation2 + $0x30] sm:$0xff]
    %v31 = vld [vmem:[#allocation2 + $0x38] sm:$0xff]
    %v32 = vld [vmem:[#allocation2 + $0x40] sm:$0xff]
    %v33 = vld [vmem:[#allocation2 + $0x48] sm:$0xff]
    %v34 = vld [vmem:[#allocation2 + $0x50] sm:$0xff]
    %v35 = vld [vmem:[#allocation2 + $0x58] sm:$0xff]
    %v36 = vld [vmem:[#allocation2 + $0x60] sm:$0xff]
    %v37 = vld [vmem:[#allocation2 + $0x68] sm:$0xff]
    %v38 = vld [vmem:[#allocation2 + $0x70] sm:$0xff]
    %v39 = vld [vmem:[#allocation2 + $0x78] sm:$0xff]
    %56 = vrot.lane.b32.xlu0 %v24, 1
    %v57 = vpop.permute.xlu0 %56
    %58 = vrot.lane.b32.xlu0 %v25, 1
    %v59 = vpop.permute.xlu0 %58
    %60 = vrot.lane.b32.xlu0 %v26, 1
    %v61 = vpop.permute.xlu0 %60
    %62 = vrot.lane.b32.xlu0 %v27, 1
    %v63 = vpop.permute.xlu0 %62
    %64 = vrot.lane.b32.xlu0 %v28, 1
    %v65 = vpop.permute.xlu0 %64
    %66 = vrot.lane.b32.xlu0 %v29, 1
    %v67 = vpop.permute.xlu0 %66
    %68 = vrot.lane.b32.xlu0 %v30, 1
    %v69 = vpop.permute.xlu0 %68
    %70 = vrot.lane.b32.xlu0 %v31, 1
    %v71 = vpop.permute.xlu0 %70
    %72 = vrot.lane.b32.xlu0 %v32, 1
    %v73 = vpop.permute.xlu0 %72
    %74 = vrot.lane.b32.xlu0 %v33, 1
    %v75 = vpop.permute.xlu0 %74
    %76 = vrot.lane.b32.xlu0 %v34, 1
    %v77 = vpop.permute.xlu0 %76
    %78 = vrot.lane.b32.xlu0 %v35, 1
    %v79 = vpop.permute.xlu0 %78
    %80 = vrot.lane.b32.xlu0 %v36, 1
    %v81 = vpop.permute.xlu0 %80
    %82 = vrot.lane.b32.xlu0 %v37, 1
    %v83 = vpop.permute.xlu0 %82
    %84 = vrot.lane.b32.xlu0 %v38, 1
    %v85 = vpop.permute.xlu0 %84
    %86 = vrot.lane.b32.xlu0 %v39, 1
    %v87 = vpop.permute.xlu0 %86
    %v104 = vsub.f32 %v24, %v57
    %v105 = vsub.f32 %v25, %v59
    %v106 = vsub.f32 %v26, %v61
    %v107 = vsub.f32 %v27, %v63
    %v108 = vsub.f32 %v28, %v65
    %v109 = vsub.f32 %v29, %v67
    %v110 = vsub.f32 %v30, %v69
    %v111 = vsub.f32 %v31, %v71
    %v112 = vsub.f32 %v32, %v73
    %v113 = vsub.f32 %v33, %v75
    %v114 = vsub.f32 %v34, %v77
    %v115 = vsub.f32 %v35, %v79
    %v116 = vsub.f32 %v36, %v81
    %v117 = vsub.f32 %v37, %v83
    %v118 = vsub.f32 %v38, %v85
    %v119 = vsub.f32 %v39, %v87
    %v120 = vmul.f32 %v104, %v104
    %v121 = vmul.f32 %v105, %v105
    %v122 = vmul.f32 %v106, %v106
    %v123 = vmul.f32 %v107, %v107
    %v124 = vmul.f32 %v108, %v108
    %v125 = vmul.f32 %v109, %v109
    %v126 = vmul.f32 %v110, %v110
    %v127 = vmul.f32 %v111, %v111
    %v128 = vmul.f32 %v112, %v112
    %v129 = vmul.f32 %v113, %v113
    %v130 = vmul.f32 %v114, %v114
    %v131 = vmul.f32 %v115, %v115
    %v132 = vmul.f32 %v116, %v116
    %v133 = vmul.f32 %v117, %v117
    %v134 = vmul.f32 %v118, %v118
    %v135 = vmul.f32 %v119, %v119
    %152 = vrot.lane.b32.xlu0 %v120, 127
    %v153 = vpop.permute.xlu0 %152
    %154 = vrot.lane.b32.xlu0 %v121, 127
    %v155 = vpop.permute.xlu0 %154
    %156 = vrot.lane.b32.xlu0 %v122, 127
    %v157 = vpop.permute.xlu0 %156
    %158 = vrot.lane.b32.xlu0 %v123, 127
    %v159 = vpop.permute.xlu0 %158
    %160 = vrot.lane.b32.xlu0 %v124, 127
    %v161 = vpop.permute.xlu0 %160
    %162 = vrot.lane.b32.xlu0 %v125, 127
    %v163 = vpop.permute.xlu0 %162
    %164 = vrot.lane.b32.xlu0 %v126, 127
    %v165 = vpop.permute.xlu0 %164
    %166 = vrot.lane.b32.xlu0 %v127, 127
    %v167 = vpop.permute.xlu0 %166
    %168 = vrot.lane.b32.xlu0 %v128, 127
    %v169 = vpop.permute.xlu0 %168
    %170 = vrot.lane.b32.xlu0 %v129, 127
    %v171 = vpop.permute.xlu0 %170
    %172 = vrot.lane.b32.xlu0 %v130, 127
    %v173 = vpop.permute.xlu0 %172
    %174 = vrot.lane.b32.xlu0 %v131, 127
    %v175 = vpop.permute.xlu0 %174
    %176 = vrot.lane.b32.xlu0 %v132, 127
    %v177 = vpop.permute.xlu0 %176
    %178 = vrot.lane.b32.xlu0 %v133, 127
    %v179 = vpop.permute.xlu0 %178
    %180 = vrot.lane.b32.xlu0 %v134, 127
    %v181 = vpop.permute.xlu0 %180
    %182 = vrot.lane.b32.xlu0 %v135, 127
    %v183 = vpop.permute.xlu0 %182
    %vm200 = vcmask 121856
    %v201 = vsel %vm200, %v153, 0.0
    %v202 = vsel %vm200, %v155, 0.0
    %v203 = vadd.f32 %v201, %v202
    %v204 = vsel %vm200, %v157, 0.0
    %v205 = vadd.f32 %v203, %v204
    %v206 = vsel %vm200, %v159, 0.0
    %v207 = vadd.f32 %v205, %v206
    %v208 = vsel %vm200, %v161, 0.0
    %v209 = vadd.f32 %v207, %v208
    %v210 = vsel %vm200, %v163, 0.0
    %v211 = vadd.f32 %v209, %v210
    %v212 = vsel %vm200, %v165, 0.0
    %v213 = vadd.f32 %v211, %v212
    %v214 = vsel %vm200, %v167, 0.0
    %v215 = vadd.f32 %v213, %v214
    %v216 = vsel %vm200, %v169, 0.0
    %v217 = vadd.f32 %v215, %v216
    %v218 = vsel %vm200, %v171, 0.0
    %v219 = vadd.f32 %v217, %v218
    %v220 = vsel %vm200, %v173, 0.0
    %v221 = vadd.f32 %v219, %v220
    %v222 = vsel %vm200, %v175, 0.0
    %v223 = vadd.f32 %v221, %v222
    %v224 = vsel %vm200, %v177, 0.0
    %v225 = vadd.f32 %v223, %v224
    %v226 = vsel %vm200, %v179, 0.0
    %v227 = vadd.f32 %v225, %v226
    %v228 = vsel %vm200, %v181, 0.0
    %v229 = vadd.f32 %v227, %v228
    %v230 = vsel %vm200, %v183, 0.0
    %v231 = vadd.f32 %v229, %v230
    %232 = vadd.xlane.f32.xlu0 %v231
    %v233 = vpop.xlane.xlu0 %232
    %v234 = vrot.slane %v233, 4
    %v235 = vadd.f32 %v233, %v234
    %v236 = vrot.slane %v235, 2
    %v237 = vadd.f32 %v235, %v236
    %v238 = vrot.slane %v237, 1
    %v239 = vadd.f32 %v237, %v238
    %s240 = vtos %v239
    %vm241 = vcmask 1040384
    %v242 = vrot.slane %v24, 7
    %v243 = vrot.slane %v25, 7
    %v244 = vsel %vm241, %v242, %v243
    %v245 = vrot.slane %v26, 7
    %v246 = vrot.slane %v27, 7
    %v247 = vsel %vm241, %v245, %v246
    %v248 = vrot.slane %v28, 7
    %v249 = vrot.slane %v29, 7
    %v250 = vsel %vm241, %v248, %v249
    %v251 = vrot.slane %v30, 7
    %v252 = vrot.slane %v31, 7
    %v253 = vsel %vm241, %v251, %v252
    %v254 = vrot.slane %v32, 7
    %v255 = vrot.slane %v33, 7
    %v256 = vsel %vm241, %v254, %v255
    %v257 = vrot.slane %v34, 7
    %v258 = vrot.slane %v35, 7
    %v259 = vsel %vm241, %v257, %v258
    %v260 = vrot.slane %v36, 7
    %v261 = vrot.slane %v37, 7
    %v262 = vsel %vm241, %v260, %v261
    %v263 = vrot.slane %v38, 7
    %v264 = vrot.slane %v39, 7
    %v265 = vsel %vm241, %v263, %v264
    %v282 = vsub.f32 %v24, %v242
    %v283 = vsub.f32 %v25, %v244
    %v284 = vsub.f32 %v26, %v245
    %v285 = vsub.f32 %v27, %v247
    %v286 = vsub.f32 %v28, %v248
    %v287 = vsub.f32 %v29, %v250
    %v288 = vsub.f32 %v30, %v251
    %v289 = vsub.f32 %v31, %v253
    %v290 = vsub.f32 %v32, %v254
    %v291 = vsub.f32 %v33, %v256
    %v292 = vsub.f32 %v34, %v257
    %v293 = vsub.f32 %v35, %v259
    %v294 = vsub.f32 %v36, %v260
    %v295 = vsub.f32 %v37, %v262
    %v296 = vsub.f32 %v38, %v263
    %v297 = vsub.f32 %v39, %v265
    %v298 = vmul.f32 %v282, %v282
    %v299 = vmul.f32 %v283, %v283
    %v300 = vmul.f32 %v284, %v284
    %v301 = vmul.f32 %v285, %v285
    %v302 = vmul.f32 %v286, %v286
    %v303 = vmul.f32 %v287, %v287
    %v304 = vmul.f32 %v288, %v288
    %v305 = vmul.f32 %v289, %v289
    %v306 = vmul.f32 %v290, %v290
    %v307 = vmul.f32 %v291, %v291
    %v308 = vmul.f32 %v292, %v292
    %v309 = vmul.f32 %v293, %v293
    %v310 = vmul.f32 %v294, %v294
    %v311 = vmul.f32 %v295, %v295
    %v312 = vmul.f32 %v296, %v296
    %v313 = vmul.f32 %v297, %v297
    %vm330 = vcmask 1046528
    %v331 = vrot.slane %v298, 1
    %v332 = vrot.slane %v299, 1
    %v333 = vsel %vm330, %v331, %v332
    %v334 = vrot.slane %v300, 1
    %v335 = vrot.slane %v301, 1
    %v336 = vsel %vm330, %v334, %v335
    %v337 = vrot.slane %v302, 1
    %v338 = vrot.slane %v303, 1
    %v339 = vsel %vm330, %v337, %v338
    %v340 = vrot.slane %v304, 1
    %v341 = vrot.slane %v305, 1
    %v342 = vsel %vm330, %v340, %v341
    %v343 = vrot.slane %v306, 1
    %v344 = vrot.slane %v307, 1
    %v345 = vsel %vm330, %v343, %v344
    %v346 = vrot.slane %v308, 1
    %v347 = vrot.slane %v309, 1
    %v348 = vsel %vm330, %v346, %v347
    %v349 = vrot.slane %v310, 1
    %v350 = vrot.slane %v311, 1
    %v351 = vsel %vm330, %v349, %v350
    %v352 = vrot.slane %v312, 1
    %v353 = vrot.slane %v313, 1
    %v354 = vsel %vm330, %v352, %v353
    %vm371 = vcmask 130048
    %v372 = vsel %vm371, %v333, 0.0
    %vm373 = vcmask 129024
    %v374 = vsel %vm373, %v332, 0.0
    %v375 = vadd.f32 %v372, %v374
    %v376 = vsel %vm371, %v336, 0.0
    %v377 = vadd.f32 %v375, %v376
    %v378 = vsel %vm373, %v335, 0.0
    %v379 = vadd.f32 %v377, %v378
    %v380 = vsel %vm371, %v339, 0.0
    %v381 = vadd.f32 %v379, %v380
    %v382 = vsel %vm373, %v338, 0.0
    %v383 = vadd.f32 %v381, %v382
    %v384 = vsel %vm371, %v342, 0.0
    %v385 = vadd.f32 %v383, %v384
    %v386 = vsel %vm373, %v341, 0.0
    %v387 = vadd.f32 %v385, %v386
    %v388 = vsel %vm371, %v345, 0.0
    %v389 = vadd.f32 %v387, %v388
    %v390 = vsel %vm373, %v344, 0.0
    %v391 = vadd.f32 %v389, %v390
    %v392 = vsel %vm371, %v348, 0.0
    %v393 = vadd.f32 %v391, %v392
    %v394 = vsel %vm373, %v347, 0.0
    %v395 = vadd.f32 %v393, %v394
    %v396 = vsel %vm371, %v351, 0.0
    %v397 = vadd.f32 %v395, %v396
    %v398 = vsel %vm373, %v350, 0.0
    %v399 = vadd.f32 %v397, %v398
    %v400 = vsel %vm371, %v354, 0.0
    %v401 = vadd.f32 %v399, %v400
    %v402 = vsel %vm373, %v353, 0.0
    %v403 = vadd.f32 %v401, %v402
    %404 = vadd.xlane.f32.xlu0 %v403
    %v405 = vpop.xlane.xlu0 %404
    %v406 = vrot.slane %v405, 4
    %v407 = vadd.f32 %v405, %v406
    %v408 = vrot.slane %v407, 2
    %v409 = vadd.f32 %v407, %v408
    %v410 = vrot.slane %v409, 1
    %v411 = vadd.f32 %v409, %v410
    %s412 = vtos %v411
    %s413 = sadd.f32 %s240, %s412
    %v414 = vstv %s413
    %415 = vst [vmem:[#allocation5] sm:$0xff] %v414
    // Predicated region
    $region10: #{tpu_custom_call.1} parent=1 // pred_check
      _
    $region11: #{tpu_custom_call.1} parent=1 // pred_check_branch
      %417 = sbr.rel (0) target = $region13
    $region12: #{tpu_custom_call.1} parent=1 // pred_region
      %s418 = sadd.s32 0, 0
      %s420 = ssub.s32 128, 128
      %421 = vsyncadd [#allocation4], %s420
      %s422 = smul.addr %s418, 128
      %s423 = scalar_lea.hbm %s1, %s422
      %s425 = sshll.u32 [#allocation5], 4
      %s426 = int_to_ptr.vmem [resolvable:$true] %s425
      %428 = dma.vmem_to_hbm [thread:$0]  %s426, 128, %s423, [#allocation4]
    $region13: #{tpu_custom_call.1} parent=1 // pred_fallthru
      _
    // Predicated region
    $region14: #{tpu_custom_call.1} parent=1 // pred_check
      _
    $region15: #{tpu_custom_call.1} parent=1 // pred_check_branch
      %430 = sbr.rel (0) target = $region17
    $region16: #{tpu_custom_call.1} parent=1 // pred_region
      %431 = dma.done [#allocation4], 128
    $region17: #{tpu_custom_call.1} parent=1 // pred_fallthru
      _
    %432 = vsyncpa [#allocation3], 1
    %433 = vsyncpa [#allocation4], 1

</llo_original>
